<compile_context>
chip_gen: v7x
topology: tpu7x:2x2x1
jax: 0.10.0
libtpu: 0.0.40
codegen_flags: <defaults>
</compile_context>

<pallas_src>
import jax
import jax.numpy as jnp
from jax.experimental import pallas as pl
from jax.experimental.pallas import tpu as pltpu


def _round_up(x, m):
    return ((x + m - 1) // m) * m


def _gelu_exact(x):
    # nn.GELU() default = exact erf-based GELU
    return 0.5 * x * (1.0 + jax.lax.erf(x * (1.0 / jnp.sqrt(2.0).astype(x.dtype))))


def gaussian_mlp_kernel(obs_ref, w1_ref, b1_ref, w2_ref, b2_ref,
                        w3_ref, b3_ref, mean_ref):
    # Feature-major: batch lives on the 128-lane axis of every operand.
    x = obs_ref[...]                                   # (obs_dim, TILE_B) f32
    wdt = w1_ref.dtype                                 # f32 or bf16 (MXU inputs)

    # Linear 1 + GELU:  (hidden, obs_dim) @ (obs_dim, TILE_B) -> (hidden, TILE_B)
    h = jnp.dot(w1_ref[...], x.astype(wdt),
                preferred_element_type=jnp.float32) + b1_ref[...]
    h = _gelu_exact(h)

    # Linear 2 + GELU:  (hidden, hidden) @ (hidden, TILE_B) -> (hidden, TILE_B)
    h = jnp.dot(w2_ref[...], h.astype(wdt),
                preferred_element_type=jnp.float32) + b2_ref[...]
    h = _gelu_exact(h)

    # Linear 3 + Tanh:  (act_dim, hidden) @ (hidden, TILE_B) -> (act_dim, TILE_B)
    m = jnp.dot(w3_ref[...], h.astype(wdt),
                preferred_element_type=jnp.float32) + b3_ref[...]
    mean_ref[...] = jnp.tanh(m)                        # lane-dense store


def gaussian_mlp_forward(obs, params, *, tile_b=2048, bf16_matmul=False):
    """Returns (mean, std) of the Normal distribution produced by forward()."""
    w1, b1, w2, b2, w3, b3, log_std = params
    B, obs_dim = obs.shape
    hidden = w1.shape[1]
    act_dim = w3.shape[1]

    # ---- Feature-major relayout (thin XLA ops in the wrapper) -----------------
    obs_t = obs.T                                      # (obs_dim, B)
    w1t, w2t, w3t = w1.T, w2.T, w3.T                   # (out_features, in_features)
    b1c = b1.reshape(hidden, 1)
    b2c = b2.reshape(hidden, 1)
    b3c = b3.reshape(act_dim, 1)
    if bf16_matmul:
        # bf16 MXU inputs, f32 accumulate (numerics deviate ~1e-3 vs f32 reference).
        w1t = w1t.astype(jnp.bfloat16)
        w2t = w2t.astype(jnp.bfloat16)
        w3t = w3t.astype(jnp.bfloat16)

    # ---- Batch tile on the lane axis ------------------------------------------
    if B <= 128:
        tb = B                                         # single (possibly sub-128) tile
    else:
        # Lane-aligned tile; prefer >=2 grid steps so v7x can shard across its 2 TCs.
        tb = max(128, min(tile_b, _round_up(pl.cdiv(B, 2), 128)))
    grid = (pl.cdiv(B, tb),)                           # ragged last block handled by Pallas

    # ---- Honest VMEM budget (cap well below v7x's 64 MiB physical VMEM) -------
    f32 = 4
    wbytes = 2 if bf16_matmul else 4
    weight_bytes = (obs_dim * hidden + hidden * hidden + hidden * act_dim) * wbytes \
                   + (2 * hidden + act_dim) * f32
    tile_io_bytes = 2 * (tb * obs_dim + tb * act_dim) * f32   # double-buffered obs/mean
    act_bytes = 2 * tb * hidden * f32                         # in-kernel activations
    vmem_limit = int(min(48 * 2**20,
                         2 * weight_bytes + tile_io_bytes + act_bytes + 8 * 2**20))
    # TODO(synk): resident weights could be single-buffered (pipeline_mode=pl.Buffered(1))
    # to shave the 2x weight term; negligible at hidden=32, so default buffering is kept.

    def resident(shape):
        # Constant index_map -> DMA'd once, stays in VMEM across all grid steps.
        return pl.BlockSpec(shape, lambda i: (0, 0))

    mean_t = pl.pallas_call(
        gaussian_mlp_kernel,
        out_shape=jax.ShapeDtypeStruct((act_dim, B), jnp.float32),
        grid=grid,
        in_specs=[
            pl.BlockSpec((obs_dim, tb), lambda i: (0, i)),    # obs tile, streamed over lanes
            resident((hidden, obs_dim)), resident((hidden, 1)),   # w1^T, b1
            resident((hidden, hidden)), resident((hidden, 1)),    # w2^T, b2
            resident((act_dim, hidden)), resident((act_dim, 1)),  # w3^T, b3
        ],
        out_specs=pl.BlockSpec((act_dim, tb), lambda i: (0, i)),  # mean tile (lane-dense)
        compiler_params=pltpu.CompilerParams(
            dimension_semantics=("parallel",),
            vmem_limit_bytes=vmem_limit,
        ),
    )(obs_t, w1t, b1c, w2t, b2c, w3t, b3c)

    mean = mean_t.T                                    # back to (B, act_dim)
    # std is batch-invariant: compute once and broadcast (no per-row kernel work).
    std = jnp.broadcast_to(jnp.exp(log_std).reshape(1, act_dim), (B, act_dim))
    return mean, std


def init_params(key, obs_dim, act_dim, hidden_size):
    """Deterministic synthetic init mimicking nn.Linear's uniform fan-in init."""
    ks = jax.random.split(key, 6)

    def linear(kw, kb, fan_in, fan_out):
        bound = 1.0 / jnp.sqrt(fan_in)
        w = jax.random.uniform(kw, (fan_in, fan_out), jnp.float32, -bound, bound)
        b = jax.random.uniform(kb, (1, fan_out), jnp.float32, -bound, bound)
        return w, b

    w1, b1 = linear(ks[0], ks[1], obs_dim, hidden_size)
    w2, b2 = linear(ks[2], ks[3], hidden_size, hidden_size)
    w3, b3 = linear(ks[4], ks[5], hidden_size, act_dim)
    log_std = jnp.zeros((1, act_dim), jnp.float32)     # nn.Parameter(zeros(act_dim))
    return (w1, b1, w2, b2, w3, b3, log_std)


def reference_forward(obs, params):
    """Pure-JAX reference of the PyTorch forward (mean, std)."""
    w1, b1, w2, b2, w3, b3, log_std = params
    h = jax.nn.gelu(obs @ w1 + b1, approximate=False)
    h = jax.nn.gelu(h @ w2 + b2, approximate=False)
    mean = jnp.tanh(h @ w3 + b3)
    std = jnp.ones_like(mean) * jnp.exp(log_std)
    return mean, std


if __name__ == "__main__":
    obs_dim, act_dim, hidden_size = 16, 4, 32

    key = jax.random.PRNGKey(0)
    k_obs, k_obs2, k_params = jax.random.split(key, 3)
    params = init_params(k_params, obs_dim, act_dim, hidden_size)

    # Test 1: tiny batch (B=8), single sub-128 lane tile.
    obs = jax.random.normal(k_obs, (8, obs_dim), jnp.float32)
    mean, std = gaussian_mlp_forward(obs, params)
    jax.block_until_ready((mean, std))
    ref_mean, ref_std = reference_forward(obs, params)
    assert jnp.allclose(mean, ref_mean, atol=1e-5, rtol=1e-5), "mean mismatch (B=8)"
    assert jnp.allclose(std, ref_std, atol=1e-6, rtol=1e-6), "std mismatch (B=8)"

    # Test 2: ragged batch (B=200) -> 2 grid steps of 128 lanes, ragged last block.
    obs2 = jax.random.normal(k_obs2, (200, obs_dim), jnp.float32)
    mean2, std2 = gaussian_mlp_forward(obs2, params)
    jax.block_until_ready((mean2, std2))
    ref_mean2, ref_std2 = reference_forward(obs2, params)
    assert jnp.allclose(mean2, ref_mean2, atol=1e-5, rtol=1e-5), "mean mismatch (B=200)"
    assert jnp.allclose(std2, ref_std2, atol=1e-6, rtol=1e-6), "std mismatch (B=200)"

    # Test 3: bf16 MXU-input path (f32 accumulate) with relaxed tolerance.
    mean3, _ = gaussian_mlp_forward(obs2, params, bf16_matmul=True)
    jax.block_until_ready(mean3)
    assert jnp.allclose(mean3, ref_mean2, atol=3e-2, rtol=3e-2), "mean mismatch (bf16)"

    # TODO(synk): Normal.sample()/log_prob()/entropy() from get_action /
    # get_compatibility are distribution utilities, not forward-pass hot path;
    # compute them in plain JAX from (mean, std) if needed.

    print("KERNEL_OK")
</pallas_src>

<mosaic_0001>
module attributes {stable_mosaic.version = 11 : i64} {
  func.func @gaussian_mlp_kernel(%arg0: i32, %arg1: memref<16x8xf32, #tpu.memory_space<vmem>>, %arg2: memref<32x16xf32, #tpu.memory_space<vmem>>, %arg3: memref<32x1xf32, #tpu.memory_space<vmem>>, %arg4: memref<32x32xf32, #tpu.memory_space<vmem>>, %arg5: memref<32x1xf32, #tpu.memory_space<vmem>>, %arg6: memref<4x32xf32, #tpu.memory_space<vmem>>, %arg7: memref<4x1xf32, #tpu.memory_space<vmem>>, %arg8: memref<4x8xf32, #tpu.memory_space<vmem>>) attributes {dimension_semantics = [#tpu.dimension_semantics<parallel>], iteration_bounds = array<i64: 1>, scalar_prefetch = 0 : i64, scratch_operands = 0 : i64, tpu.core_type = #tpu.core_type<tc>, window_params = [{transform_indices = @transform_0, window_bounds = array<i64: 16, 8>}, {pipeline_mode = #tpu.pipeline_mode<synchronous>, transform_indices = @transform_1, window_bounds = array<i64: 32, 16>}, {pipeline_mode = #tpu.pipeline_mode<synchronous>, transform_indices = @transform_2, window_bounds = array<i64: 32, 1>}, {pipeline_mode = #tpu.pipeline_mode<synchronous>, transform_indices = @transform_3, window_bounds = array<i64: 32, 32>}, {pipeline_mode = #tpu.pipeline_mode<synchronous>, transform_indices = @transform_4, window_bounds = array<i64: 32, 1>}, {pipeline_mode = #tpu.pipeline_mode<synchronous>, transform_indices = @transform_5, window_bounds = array<i64: 4, 32>}, {pipeline_mode = #tpu.pipeline_mode<synchronous>, transform_indices = @transform_6, window_bounds = array<i64: 4, 1>}, {transform_indices = @transform_7, window_bounds = array<i64: 4, 8>}]} {
    %c0 = arith.constant 0 : index
    %c0_0 = arith.constant 0 : index
    %0 = vector.load %arg1[%c0, %c0_0] : memref<16x8xf32, #tpu.memory_space<vmem>>, vector<16x8xf32>
    %c0_1 = arith.constant 0 : index
    %c0_2 = arith.constant 0 : index
    %1 = vector.load %arg2[%c0_1, %c0_2] : memref<32x16xf32, #tpu.memory_space<vmem>>, vector<32x16xf32>
    %cst = arith.constant dense<0.000000e+00> : vector<32x8xf32>
    %2 = tpu.matmul %1, %0, %cst {dimension_numbers = #tpu.dot_dimension_numbers<[1], [0], [0], [1], [0, 0, 1, 1], [], []>} : vector<32x16xf32>, vector<16x8xf32>, vector<32x8xf32> -> vector<32x8xf32>
    %c0_3 = arith.constant 0 : index
    %c0_4 = arith.constant 0 : index
    %3 = vector.load %arg3[%c0_3, %c0_4] : memref<32x1xf32, #tpu.memory_space<vmem>>, vector<32x1xf32>
    %4 = vector.broadcast %3 : vector<32x1xf32> to vector<32x8xf32>
    %5 = arith.addf %2, %4 : vector<32x8xf32>
    %cst_5 = arith.constant 5.000000e-01 : f32
    %6 = vector.broadcast %cst_5 : f32 to vector<32x8xf32>
    %7 = arith.mulf %6, %5 : vector<32x8xf32>
    %cst_6 = arith.constant 2.000000e+00 : f32
    %8 = math.sqrt %cst_6 : f32
    %cst_7 = arith.constant 1.000000e+00 : f32
    %9 = arith.divf %cst_7, %8 : f32
    %10 = vector.broadcast %9 : f32 to vector<32x8xf32>
    %11 = arith.mulf %5, %10 : vector<32x8xf32>
    %12 = math.erf %11 : vector<32x8xf32>
    %cst_8 = arith.constant 1.000000e+00 : f32
    %13 = vector.broadcast %cst_8 : f32 to vector<32x8xf32>
    %14 = arith.addf %13, %12 : vector<32x8xf32>
    %15 = arith.mulf %7, %14 : vector<32x8xf32>
    %c0_9 = arith.constant 0 : index
    %c0_10 = arith.constant 0 : index
    %16 = vector.load %arg4[%c0_9, %c0_10] : memref<32x32xf32, #tpu.memory_space<vmem>>, vector<32x32xf32>
    %cst_11 = arith.constant dense<0.000000e+00> : vector<32x8xf32>
    %17 = tpu.matmul %16, %15, %cst_11 {dimension_numbers = #tpu.dot_dimension_numbers<[1], [0], [0], [1], [0, 0, 1, 1], [], []>} : vector<32x32xf32>, vector<32x8xf32>, vector<32x8xf32> -> vector<32x8xf32>
    %c0_12 = arith.constant 0 : index
    %c0_13 = arith.constant 0 : index
    %18 = vector.load %arg5[%c0_12, %c0_13] : memref<32x1xf32, #tpu.memory_space<vmem>>, vector<32x1xf32>
    %19 = vector.broadcast %18 : vector<32x1xf32> to vector<32x8xf32>
    %20 = arith.addf %17, %19 : vector<32x8xf32>
    %cst_14 = arith.constant 5.000000e-01 : f32
    %21 = vector.broadcast %cst_14 : f32 to vector<32x8xf32>
    %22 = arith.mulf %21, %20 : vector<32x8xf32>
    %cst_15 = arith.constant 2.000000e+00 : f32
    %23 = math.sqrt %cst_15 : f32
    %cst_16 = arith.constant 1.000000e+00 : f32
    %24 = arith.divf %cst_16, %23 : f32
    %25 = vector.broadcast %24 : f32 to vector<32x8xf32>
    %26 = arith.mulf %20, %25 : vector<32x8xf32>
    %27 = math.erf %26 : vector<32x8xf32>
    %cst_17 = arith.constant 1.000000e+00 : f32
    %28 = vector.broadcast %cst_17 : f32 to vector<32x8xf32>
    %29 = arith.addf %28, %27 : vector<32x8xf32>
    %30 = arith.mulf %22, %29 : vector<32x8xf32>
    %c0_18 = arith.constant 0 : index
    %c0_19 = arith.constant 0 : index
    %31 = vector.load %arg6[%c0_18, %c0_19] : memref<4x32xf32, #tpu.memory_space<vmem>>, vector<4x32xf32>
    %cst_20 = arith.constant dense<0.000000e+00> : vector<4x8xf32>
    %32 = tpu.matmul %31, %30, %cst_20 {dimension_numbers = #tpu.dot_dimension_numbers<[1], [0], [0], [1], [0, 0, 1, 1], [], []>} : vector<4x32xf32>, vector<32x8xf32>, vector<4x8xf32> -> vector<4x8xf32>
    %c0_21 = arith.constant 0 : index
    %c0_22 = arith.constant 0 : index
    %33 = vector.load %arg7[%c0_21, %c0_22] : memref<4x1xf32, #tpu.memory_space<vmem>>, vector<4x1xf32>
    %34 = vector.broadcast %33 : vector<4x1xf32> to vector<4x8xf32>
    %35 = arith.addf %32, %34 : vector<4x8xf32>
    %36 = math.tanh %35 : vector<4x8xf32>
    %c0_23 = arith.constant 0 : index
    %c0_24 = arith.constant 0 : index
    %37 = vector.load %arg8[%c0_23, %c0_24] : memref<4x8xf32, #tpu.memory_space<vmem>>, vector<4x8xf32>
    tpu.vector_store %arg8[%c0_23, %c0_24], %36 {strides = array<i32>} : memref<4x8xf32, #tpu.memory_space<vmem>>, vector<4x8xf32>,
    return
  }
  func.func @transform_0(%arg0: i32) -> (i32, i32) {
    %c0_i32 = arith.constant 0 : i32
    %c0_i32_0 = arith.constant 0 : i32
    return %c0_i32, %arg0 : i32, i32
  }
  func.func @transform_1(%arg0: i32) -> (i32, i32) {
    %c0_i32 = arith.constant 0 : i32
    %c0_i32_0 = arith.constant 0 : i32
    %c0_i32_1 = arith.constant 0 : i32
    return %c0_i32, %c0_i32_0 : i32, i32
  }
  func.func @transform_2(%arg0: i32) -> (i32, i32) {
    %c0_i32 = arith.constant 0 : i32
    %c0_i32_0 = arith.constant 0 : i32
    %c0_i32_1 = arith.constant 0 : i32
    return %c0_i32, %c0_i32_0 : i32, i32
  }
  func.func @transform_3(%arg0: i32) -> (i32, i32) {
    %c0_i32 = arith.constant 0 : i32
    %c0_i32_0 = arith.constant 0 : i32
    %c0_i32_1 = arith.constant 0 : i32
    return %c0_i32, %c0_i32_0 : i32, i32
  }
  func.func @transform_4(%arg0: i32) -> (i32, i32) {
    %c0_i32 = arith.constant 0 : i32
    %c0_i32_0 = arith.constant 0 : i32
    %c0_i32_1 = arith.constant 0 : i32
    return %c0_i32, %c0_i32_0 : i32, i32
  }
  func.func @transform_5(%arg0: i32) -> (i32, i32) {
    %c0_i32 = arith.constant 0 : i32
    %c0_i32_0 = arith.constant 0 : i32
    %c0_i32_1 = arith.constant 0 : i32
    return %c0_i32, %c0_i32_0 : i32, i32
  }
  func.func @transform_6(%arg0: i32) -> (i32, i32) {
    %c0_i32 = arith.constant 0 : i32
    %c0_i32_0 = arith.constant 0 : i32
    %c0_i32_1 = arith.constant 0 : i32
    return %c0_i32, %c0_i32_0 : i32, i32
  }
  func.func @transform_7(%arg0: i32) -> (i32, i32) {
    %c0_i32 = arith.constant 0 : i32
    %c0_i32_0 = arith.constant 0 : i32
    return %c0_i32, %arg0 : i32, i32
  }
}

</mosaic_0001>

<llo_original>
// kernel: tpu_custom_call.1
$region0: #{tpu_custom_call.1}
  #allocation0 [shape = 'u32[]', space=smem, size = 0x4, offset = 0x4, fixed_abs, tag = 'smem constant byte address 0x4 - core index']
  #allocation1 [shape = 'u32[144,128]{1,0:T(1,128)}', space=vmem, size = 0x12000, scoped, tag = 'internal scratch']
  %s0 = inlined_call_operand.vmem [shape: f32[16,8], index: 0, kind: input, shape index: {}]
  %s1 = inlined_call_operand.vmem [shape: f32[32,16], index: 1, kind: input, shape index: {}]
  %s2 = inlined_call_operand.vmem [shape: f32[32,1], index: 2, kind: input, shape index: {}]
  %s3 = inlined_call_operand.vmem [shape: f32[32,32], index: 3, kind: input, shape index: {}]
  %s4 = inlined_call_operand.vmem [shape: f32[32,1], index: 4, kind: input, shape index: {}]
  %s5 = inlined_call_operand.vmem [shape: f32[4,32], index: 5, kind: input, shape index: {}]
  %s6 = inlined_call_operand.vmem [shape: f32[4,1], index: 6, kind: input, shape index: {}]
  %s7 = inlined_call_operand.hbm [shape: f32[4,8], index: 7, kind: output, shape index: {}]
  %s8 = sld [smem:[#allocation0]]
  $region38: #{tpu_custom_call.1} parent=0
    _
  %s10 = ssub.s32 1, %s8
  %s11 = scalar_select 0, %s10, %s8
  $region1: #{tpu_custom_call.1} parent=0
    #allocation2 [shape = 'u8[2048]{0}', space=vmem, size = 0x800, scoped, tag = 'output window, operand 0, single buffered']
    #allocation3 [shape = 's32[1]{0}', space=sflag, size = 0x4, scoped, tag = 'scoped memory for tpu_custom_call.1']
    %12 = vsyncpa [#allocation3], 0
    // Predicated region
    $region2: #{tpu_custom_call.1} parent=1 // pred_check
      _
    $region3: #{tpu_custom_call.1} parent=1 // pred_check_branch
      %14 = sbr.rel (0) target = $region5
    $region4: #{tpu_custom_call.1} parent=1 // pred_region
      _
    $region5: #{tpu_custom_call.1} parent=1 // pred_fallthru
      _
    // Predicated region
    $region6: #{tpu_custom_call.1} parent=1 // pred_check
      _
    $region7: #{tpu_custom_call.1} parent=1 // pred_check_branch
      %16 = sbr.rel (0) target = $region9
    $region8: #{tpu_custom_call.1} parent=1 // pred_region
      _
    $region9: #{tpu_custom_call.1} parent=1 // pred_fallthru
      _
    // Predicated region
    $region10: #{tpu_custom_call.1} parent=1 // pred_check
      _
    $region11: #{tpu_custom_call.1} parent=1 // pred_check_branch
      %18 = sbr.rel (0) target = $region13
    $region12: #{tpu_custom_call.1} parent=1 // pred_region
      _
    $region13: #{tpu_custom_call.1} parent=1 // pred_fallthru
      _
    // Predicated region
    $region14: #{tpu_custom_call.1} parent=1 // pred_check
      _
    $region15: #{tpu_custom_call.1} parent=1 // pred_check_branch
      %20 = sbr.rel (0) target = $region17
    $region16: #{tpu_custom_call.1} parent=1 // pred_region
      _
    $region17: #{tpu_custom_call.1} parent=1 // pred_fallthru
      _
    // Predicated region
    $region18: #{tpu_custom_call.1} parent=1 // pred_check
      _
    $region19: #{tpu_custom_call.1} parent=1 // pred_check_branch
      %22 = sbr.rel (0) target = $region21
    $region20: #{tpu_custom_call.1} parent=1 // pred_region
      _
    $region21: #{tpu_custom_call.1} parent=1 // pred_fallthru
      _
    // Predicated region
    $region22: #{tpu_custom_call.1} parent=1 // pred_check
      _
    $region23: #{tpu_custom_call.1} parent=1 // pred_check_branch
      %24 = sbr.rel (0) target = $region25
    $region24: #{tpu_custom_call.1} parent=1 // pred_region
      _
    $region25: #{tpu_custom_call.1} parent=1 // pred_fallthru
      _
    // Predicated region
    $region26: #{tpu_custom_call.1} parent=1 // pred_check
      _
    $region27: #{tpu_custom_call.1} parent=1 // pred_check_branch
      %26 = sbr.rel (0) target = $region29
    $region28: #{tpu_custom_call.1} parent=1 // pred_region
      _
    $region29: #{tpu_custom_call.1} parent=1 // pred_fallthru
      _
    %v27 = vld [vmem:[%s0] sm:$0xff]
    %v28 = vld [vmem:[%s0 + $0x8] sm:$0xff]
    %v29 = vld [vmem:[%s1] sm:$0xff]
    %v30 = vld [vmem:[%s1 + $0x8] sm:$0xff]
    %v31 = vld [vmem:[%s1 + $0x10] sm:$0xff]
    %v32 = vld [vmem:[%s1 + $0x18] sm:$0xff]
    %v33 = vld [vmem:[%s2] sm:$0xff]
    %v34 = vld [vmem:[%s2 + $0x8] sm:$0xff]
    %v35 = vld [vmem:[%s2 + $0x10] sm:$0xff]
    %v36 = vld [vmem:[%s2 + $0x18] sm:$0xff]
    %38 = vset.pattern.permute.xlu0 0
    %39 = vperm.xlu0 %38, %v33
    %v40 = vpop.permute.xlu0 %39
    %43 = vset.pattern.permute.xlu0 0
    %44 = vperm.xlu0 %43, %v34
    %v45 = vpop.permute.xlu0 %44
    %48 = vset.pattern.permute.xlu0 0
    %49 = vperm.xlu0 %48, %v35
    %v50 = vpop.permute.xlu0 %49
    %53 = vset.pattern.permute.xlu0 0
    %54 = vperm.xlu0 %53, %v36
    %v55 = vpop.permute.xlu0 %54
    %vm57 = vcmask 130048
    %v59 = vsel %vm57, %v29, 0
    %v62 = vsel %vm57, %v30, 0
    %v65 = vsel %vm57, %v31, 0
    %v68 = vsel %vm57, %v32, 0
    %70 = vmatprep.subr.mxu0 0.0
    %71 = vmatpush1.msra.mxu0 %v27
    %72 = vmatprep.subr.mxu0 0.0
    %73 = vmatpush1.msra.mxu0 %v28
    %74 = vmatprep.subr.mxu0 0.0
    %75 = vmatpush1.msra.mxu0 0.0
    %76 = vmatprep.subr.mxu0 0.0
    %77 = vmatpush1.msra.mxu0 0.0
    %78 = vmatprep.subr.mxu0 0.0
    %79 = vmatpush1.msra.mxu0 0.0
    %80 = vmatprep.subr.mxu0 0.0
    %81 = vmatpush1.msra.mxu0 0.0
    %82 = vmatprep.subr.mxu0 0.0
    %83 = vmatpush1.msra.mxu0 0.0
    %84 = vmatprep.subr.mxu0 0.0
    %85 = vmatpush1.msra.mxu0 0.0
    %86 = vmatprep.subr.mxu0 0.0
    %87 = vmatpush1.msra.mxu0 0.0
    %88 = vmatprep.subr.mxu0 0.0
    %89 = vmatpush1.msra.mxu0 0.0
    %90 = vmatprep.subr.mxu0 0.0
    %91 = vmatpush1.msra.mxu0 0.0
    %92 = vmatprep.subr.mxu0 0.0
    %93 = vmatpush1.msra.mxu0 0.0
    %94 = vmatprep.subr.mxu0 0.0
    %95 = vmatpush1.msra.mxu0 0.0
    %96 = vmatprep.subr.mxu0 0.0
    %97 = vmatpush1.msra.mxu0 0.0
    %98 = vmatprep.subr.mxu0 0.0
    %99 = vmatpush1.msra.mxu0 0.0
    %100 = vmatprep.subr.mxu0 0.0
    %101 = vmatpush1.msra.mxu0 0.0
    %102 = vmatprep.subr.mxu0 0.0
    %103 = vmatpush1.msra.mxu0 0.0
    %104 = vmatprep.subr.mxu0 0.0
    %105 = vmatpush1.msra.mxu0 0.0
    %106 = vmatprep.subr.mxu0 0.0
    %107 = vmatpush1.msra.mxu0 0.0
    %108 = vmatprep.subr.mxu0 0.0
    %109 = vmatpush1.msra.mxu0 0.0
    %110 = vmatprep.subr.mxu0 0.0
    %111 = vmatpush1.msra.mxu0 0.0
    %112 = vmatprep.subr.mxu0 0.0
    %113 = vmatpush1.msra.mxu0 0.0
    %114 = vmatprep.subr.mxu0 0.0
    %115 = vmatpush1.msra.mxu0 0.0
    %116 = vmatprep.subr.mxu0 0.0
    %117 = vmatpush1.msra.mxu0 0.0
    %118 = vmatprep.subr.mxu0 0.0
    %119 = vmatpush1.msra.mxu0 0.0
    %120 = vmatprep.subr.mxu0 0.0
    %121 = vmatpush1.msra.mxu0 0.0
    %122 = vmatprep.subr.mxu0 0.0
    %123 = vmatpush1.msra.mxu0 0.0
    %124 = vmatprep.subr.mxu0 0.0
    %125 = vmatpush1.msra.mxu0 0.0
    %126 = vmatprep.subr.mxu0 0.0
    %127 = vmatpush1.msra.mxu0 0.0
    %128 = vmatprep.subr.mxu0 0.0
    %129 = vmatpush1.msra.mxu0 0.0
    %130 = vmatprep.subr.mxu0 0.0
    %131 = vmatpush1.msra.mxu0 0.0
    %132 = vmatprep.subr.mxu0 0.0
    %133 = vmatpush1.msra.mxu0 0.0
    %134 = vmatprep.mubr.f32.mxu0 0.0
    %135 = vmatmul.mubr.f32.gmra.mrb[0].mxu0 %v59
    %v136 = vpop.f32.mrb[0].mxu0
    %v137 = vadd.f32 %v40, %v136
    %v138 = vpop.f32.mrb[0].mxu0
    %139 = vmatprep.mubr.f32.mxu0 0.0
    %140 = vmatmul.mubr.f32.gmra.mrb[0].mxu0 %v62
    %v141 = vpop.f32.mrb[0].mxu0
    %v142 = vadd.f32 %v45, %v141
    %v143 = vpop.f32.mrb[0].mxu0
    %144 = vmatprep.mubr.f32.mxu0 0.0
    %145 = vmatmul.mubr.f32.gmra.mrb[0].mxu0 %v65
    %v146 = vpop.f32.mrb[0].mxu0
    %v147 = vadd.f32 %v50, %v146
    %v148 = vpop.f32.mrb[0].mxu0
    %149 = vmatprep.mubr.f32.mxu0 0.0
    %150 = vmatmul.mubr.f32.gmra.mrb[0].mxu0 %v68
    %v151 = vpop.f32.mrb[0].mxu0
    %v152 = vadd.f32 %v55, %v151
    %v153 = vpop.f32.mrb[0].mxu0
    %154 = vdwg.mxu0
    %v155 = vmul.f32 %v137, 0.5
    %v156 = vmul.f32 %v142, 0.5
    %v157 = vmul.f32 %v147, 0.5
    %v158 = vmul.f32 %v152, 0.5
    %v159 = vmul.f32 %v137, 0.70710677
    %v160 = vmul.f32 %v142, 0.70710677
    %v161 = vmul.f32 %v147, 0.70710677
    %v162 = vmul.f32 %v152, 0.70710677
    %v163 = verf.f32.pop %v159
    %v164 = verf.f32.pop %v160
    %v165 = verf.f32.pop %v161
    %v166 = verf.f32.pop %v162
    %v167 = vadd.f32 %v163, 1.0
    %v168 = vadd.f32 %v164, 1.0
    %v169 = vadd.f32 %v165, 1.0
    %v170 = vadd.f32 %v166, 1.0
    %v171 = vmul.f32 %v155, %v167
    %v172 = vmul.f32 %v156, %v168
    %v173 = vmul.f32 %v157, %v169
    %v174 = vmul.f32 %v158, %v170
    %v175 = vld [vmem:[%s3] sm:$0xff]
    %v176 = vld [vmem:[%s3 + $0x8] sm:$0xff]
    %v177 = vld [vmem:[%s3 + $0x10] sm:$0xff]
    %v178 = vld [vmem:[%s3 + $0x18] sm:$0xff]
    %v179 = vld [vmem:[%s4] sm:$0xff]
    %v180 = vld [vmem:[%s4 + $0x8] sm:$0xff]
    %v181 = vld [vmem:[%s4 + $0x10] sm:$0xff]
    %v182 = vld [vmem:[%s4 + $0x18] sm:$0xff]
    %184 = vset.pattern.permute.xlu0 0
    %185 = vperm.xlu0 %184, %v179
    %v186 = vpop.permute.xlu0 %185
    %189 = vset.pattern.permute.xlu0 0
    %190 = vperm.xlu0 %189, %v180
    %v191 = vpop.permute.xlu0 %190
    %194 = vset.pattern.permute.xlu0 0
    %195 = vperm.xlu0 %194, %v181
    %v196 = vpop.permute.xlu0 %195
    %199 = vset.pattern.permute.xlu0 0
    %200 = vperm.xlu0 %199, %v182
    %v201 = vpop.permute.xlu0 %200
    %vm203 = vcmask 261120
    %v205 = vsel %vm203, %v175, 0
    %v208 = vsel %vm203, %v176, 0
    %v211 = vsel %vm203, %v177, 0
    %v214 = vsel %vm203, %v178, 0
    %216 = vmatprep.subr.mxu0 0.0
    %217 = vmatpush1.msra.mxu0 %v171
    %218 = vmatprep.subr.mxu0 0.0
    %219 = vmatpush1.msra.mxu0 %v172
    %220 = vmatprep.subr.mxu0 0.0
    %221 = vmatpush1.msra.mxu0 %v173
    %222 = vmatprep.subr.mxu0 0.0
    %223 = vmatpush1.msra.mxu0 %v174
    %224 = vmatprep.subr.mxu0 0.0
    %225 = vmatpush1.msra.mxu0 0.0
    %226 = vmatprep.subr.mxu0 0.0
    %227 = vmatpush1.msra.mxu0 0.0
    %228 = vmatprep.subr.mxu0 0.0
    %229 = vmatpush1.msra.mxu0 0.0
    %230 = vmatprep.subr.mxu0 0.0
    %231 = vmatpush1.msra.mxu0 0.0
    %232 = vmatprep.subr.mxu0 0.0
    %233 = vmatpush1.msra.mxu0 0.0
    %234 = vmatprep.subr.mxu0 0.0
    %235 = vmatpush1.msra.mxu0 0.0
    %236 = vmatprep.subr.mxu0 0.0
    %237 = vmatpush1.msra.mxu0 0.0
    %238 = vmatprep.subr.mxu0 0.0
    %239 = vmatpush1.msra.mxu0 0.0
    %240 = vmatprep.subr.mxu0 0.0
    %241 = vmatpush1.msra.mxu0 0.0
    %242 = vmatprep.subr.mxu0 0.0
    %243 = vmatpush1.msra.mxu0 0.0
    %244 = vmatprep.subr.mxu0 0.0
    %245 = vmatpush1.msra.mxu0 0.0
    %246 = vmatprep.subr.mxu0 0.0
    %247 = vmatpush1.msra.mxu0 0.0
    %248 = vmatprep.subr.mxu0 0.0
    %249 = vmatpush1.msra.mxu0 0.0
    %250 = vmatprep.subr.mxu0 0.0
    %251 = vmatpush1.msra.mxu0 0.0
    %252 = vmatprep.subr.mxu0 0.0
    %253 = vmatpush1.msra.mxu0 0.0
    %254 = vmatprep.subr.mxu0 0.0
    %255 = vmatpush1.msra.mxu0 0.0
    %256 = vmatprep.subr.mxu0 0.0
    %257 = vmatpush1.msra.mxu0 0.0
    %258 = vmatprep.subr.mxu0 0.0
    %259 = vmatpush1.msra.mxu0 0.0
    %260 = vmatprep.subr.mxu0 0.0
    %261 = vmatpush1.msra.mxu0 0.0
    %262 = vmatprep.subr.mxu0 0.0
    %263 = vmatpush1.msra.mxu0 0.0
    %264 = vmatprep.subr.mxu0 0.0
    %265 = vmatpush1.msra.mxu0 0.0
    %266 = vmatprep.subr.mxu0 0.0
    %267 = vmatpush1.msra.mxu0 0.0
    %268 = vmatprep.subr.mxu0 0.0
    %269 = vmatpush1.msra.mxu0 0.0
    %270 = vmatprep.subr.mxu0 0.0
    %271 = vmatpush1.msra.mxu0 0.0
    %272 = vmatprep.subr.mxu0 0.0
    %273 = vmatpush1.msra.mxu0 0.0
    %274 = vmatprep.subr.mxu0 0.0
    %275 = vmatpush1.msra.mxu0 0.0
    %276 = vmatprep.subr.mxu0 0.0
    %277 = vmatpush1.msra.mxu0 0.0
    %278 = vmatprep.subr.mxu0 0.0
    %279 = vmatpush1.msra.mxu0 0.0
    %280 = vmatprep.mubr.f32.mxu0 0.0
    %281 = vmatmul.mubr.f32.gmra.mrb[0].mxu0 %v205
    %v282 = vpop.f32.mrb[0].mxu0
    %v283 = vadd.f32 %v186, %v282
    %v284 = vpop.f32.mrb[0].mxu0
    %285 = vmatprep.mubr.f32.mxu0 0.0
    %286 = vmatmul.mubr.f32.gmra.mrb[0].mxu0 %v208
    %v287 = vpop.f32.mrb[0].mxu0
    %v288 = vadd.f32 %v191, %v287
    %v289 = vpop.f32.mrb[0].mxu0
    %290 = vmatprep.mubr.f32.mxu0 0.0
    %291 = vmatmul.mubr.f32.gmra.mrb[0].mxu0 %v211
    %v292 = vpop.f32.mrb[0].mxu0
    %v293 = vadd.f32 %v196, %v292
    %v294 = vpop.f32.mrb[0].mxu0
    %295 = vmatprep.mubr.f32.mxu0 0.0
    %296 = vmatmul.mubr.f32.gmra.mrb[0].mxu0 %v214
    %v297 = vpop.f32.mrb[0].mxu0
    %v298 = vadd.f32 %v201, %v297
    %v299 = vpop.f32.mrb[0].mxu0
    %300 = vdwg.mxu0
    %v301 = vmul.f32 %v283, 0.5
    %v302 = vmul.f32 %v288, 0.5
    %v303 = vmul.f32 %v293, 0.5
    %v304 = vmul.f32 %v298, 0.5
    %v305 = vmul.f32 %v283, 0.70710677
    %v306 = vmul.f32 %v288, 0.70710677
    %v307 = vmul.f32 %v293, 0.70710677
    %v308 = vmul.f32 %v298, 0.70710677
    %v309 = verf.f32.pop %v305
    %v310 = verf.f32.pop %v306
    %v311 = verf.f32.pop %v307
    %v312 = verf.f32.pop %v308
    %v313 = vadd.f32 %v309, 1.0
    %v314 = vadd.f32 %v310, 1.0
    %v315 = vadd.f32 %v311, 1.0
    %v316 = vadd.f32 %v312, 1.0
    %v317 = vmul.f32 %v301, %v313
    %v318 = vmul.f32 %v302, %v314
    %v319 = vmul.f32 %v303, %v315
    %v320 = vmul.f32 %v304, %v316
    %v321 = vld [vmem:[%s5] sm:$0xf]
    %v322 = vld [vmem:[%s6] sm:$0xf]
    %324 = vset.pattern.permute.xlu0 0
    %325 = vperm.xlu0 %324, %v322
    %v326 = vpop.permute.xlu0 %325
    %v329 = vsel %vm203, %v321, 0
    %331 = vmatprep.subr.mxu0 0.0
    %332 = vmatpush1.msra.mxu0 %v317
    %333 = vmatprep.subr.mxu0 0.0
    %334 = vmatpush1.msra.mxu0 %v318
    %335 = vmatprep.subr.mxu0 0.0
    %336 = vmatpush1.msra.mxu0 %v319
    %337 = vmatprep.subr.mxu0 0.0
    %338 = vmatpush1.msra.mxu0 %v320
    %339 = vmatprep.subr.mxu0 0.0
    %340 = vmatpush1.msra.mxu0 0.0
    %341 = vmatprep.subr.mxu0 0.0
    %342 = vmatpush1.msra.mxu0 0.0
    %343 = vmatprep.subr.mxu0 0.0
    %344 = vmatpush1.msra.mxu0 0.0
    %345 = vmatprep.subr.mxu0 0.0
    %346 = vmatpush1.msra.mxu0 0.0
    %347 = vmatprep.subr.mxu0 0.0
    %348 = vmatpush1.msra.mxu0 0.0
    %349 = vmatprep.subr.mxu0 0.0
    %350 = vmatpush1.msra.mxu0 0.0
    %351 = vmatprep.subr.mxu0 0.0
    %352 = vmatpush1.msra.mxu0 0.0
    %353 = vmatprep.subr.mxu0 0.0
    %354 = vmatpush1.msra.mxu0 0.0
    %355 = vmatprep.subr.mxu0 0.0
    %356 = vmatpush1.msra.mxu0 0.0
    %357 = vmatprep.subr.mxu0 0.0
    %358 = vmatpush1.msra.mxu0 0.0
    %359 = vmatprep.subr.mxu0 0.0
    %360 = vmatpush1.msra.mxu0 0.0
    %361 = vmatprep.subr.mxu0 0.0
    %362 = vmatpush1.msra.mxu0 0.0
    %363 = vmatprep.subr.mxu0 0.0
    %364 = vmatpush1.msra.mxu0 0.0
    %365 = vmatprep.subr.mxu0 0.0
    %366 = vmatpush1.msra.mxu0 0.0
    %367 = vmatprep.subr.mxu0 0.0
    %368 = vmatpush1.msra.mxu0 0.0
    %369 = vmatprep.subr.mxu0 0.0
    %370 = vmatpush1.msra.mxu0 0.0
    %371 = vmatprep.subr.mxu0 0.0
    %372 = vmatpush1.msra.mxu0 0.0
    %373 = vmatprep.subr.mxu0 0.0
    %374 = vmatpush1.msra.mxu0 0.0
    %375 = vmatprep.subr.mxu0 0.0
    %376 = vmatpush1.msra.mxu0 0.0
    %377 = vmatprep.subr.mxu0 0.0
    %378 = vmatpush1.msra.mxu0 0.0
    %379 = vmatprep.subr.mxu0 0.0
    %380 = vmatpush1.msra.mxu0 0.0
    %381 = vmatprep.subr.mxu0 0.0
    %382 = vmatpush1.msra.mxu0 0.0
    %383 = vmatprep.subr.mxu0 0.0
    %384 = vmatpush1.msra.mxu0 0.0
    %385 = vmatprep.subr.mxu0 0.0
    %386 = vmatpush1.msra.mxu0 0.0
    %387 = vmatprep.subr.mxu0 0.0
    %388 = vmatpush1.msra.mxu0 0.0
    %389 = vmatprep.subr.mxu0 0.0
    %390 = vmatpush1.msra.mxu0 0.0
    %391 = vmatprep.subr.mxu0 0.0
    %392 = vmatpush1.msra.mxu0 0.0
    %393 = vmatprep.subr.mxu0 0.0
    %394 = vmatpush1.msra.mxu0 0.0
    %395 = vmatprep.mubr.f32.mxu0 0.0
    %396 = vmatmul.mubr.f32.gmra.mrb[0].mxu0 %v329
    %v397 = vpop.f32.mrb[0].mxu0
    %v398 = vadd.f32 %v326, %v397
    %v399 = vpop.f32.mrb[0].mxu0
    %400 = vdwg.mxu0
    %v401 = vtanh.pop %v398
    %vm402 = vcmask 60416
    %403 = vst.msk [vmem:[#allocation2] sm:$0xf] %vm402, %v401
    // Predicated region
    $region30: #{tpu_custom_call.1} parent=1 // pred_check
      _
    $region31: #{tpu_custom_call.1} parent=1 // pred_check_branch
      %405 = sbr.rel (0) target = $region33
    $region32: #{tpu_custom_call.1} parent=1 // pred_region
      %s407 = ssub.s32 64, 64
      %408 = vsyncadd [#allocation3], %s407
      %s410 = sshll.u32 [#allocation2], 4
      %s411 = int_to_ptr.vmem [resolvable:$true] %s410
      %413 = dma.vmem_to_hbm [thread:$0]  %s411, 64, %s7, [#allocation3]
    $region33: #{tpu_custom_call.1} parent=1 // pred_fallthru
      _
    // Predicated region
    $region34: #{tpu_custom_call.1} parent=1 // pred_check
      _
    $region35: #{tpu_custom_call.1} parent=1 // pred_check_branch
      %415 = sbr.rel (0) target = $region37
    $region36: #{tpu_custom_call.1} parent=1 // pred_region
      %416 = dma.done [#allocation3], 64
    $region37: #{tpu_custom_call.1} parent=1 // pred_fallthru
      _
    %417 = vsyncpa [#allocation3], 1

</llo_original>
